<compile_context>
chip_gen: v7x
topology: tpu7x:2x2x1
jax: 0.10.0
libtpu: 0.0.40
codegen_flags: <defaults>
</compile_context>

<pallas_src>
import numpy as np
import jax
import jax.numpy as jnp
from jax.experimental import pallas as pl
from jax.experimental.pallas import tpu as pltpu


def _round_up(x, m):
    return ((x + m - 1) // m) * m


def _vmem_budget_bytes():
    """~75% of per-core VMEM (v7x: ~48 MiB, v5e/v6e: ~96 MiB); safe fallback 48 MiB."""
    try:
        cap = int(pltpu.get_tpu_info().vmem_capacity_bytes)
    except Exception:
        cap = 64 << 20
    return max((cap * 3) // 4, 32 << 20)


def _make_vq_kernel_resident(emit_dist, matmul_dtype):
    """Whole codebook resident in VMEM; grid = (N tiles,)."""
    def kernel(x_ref, esq_ref, cb_ref, idx_ref, *maybe_dist):
        dist_ref = maybe_dist[0] if emit_dist else None

        x = x_ref[...]                                   # (tn, D_pad), input dtype
        e = cb_ref[...]                                  # (K_pad, D_pad)

        # cross term on the MXU, contracting D of both operands (no transpose)
        cross = jax.lax.dot_general(
            x.astype(matmul_dtype), e.astype(matmul_dtype),
            dimension_numbers=(((1,), (1,)), ((), ())),
            preferred_element_type=jnp.float32)          # (tn, K_pad)

        if emit_dist:
            xf = x.astype(jnp.float32)
            xsq = jnp.sum(xf * xf, axis=1, keepdims=True)
            dist = (xsq + esq_ref[...]) - 2.0 * cross
            dist_ref[...] = dist.astype(dist_ref.dtype)
            score = dist
        else:
            # argmin over K is invariant to the per-row ||x||^2 constant
            score = esq_ref[...] - 2.0 * cross

        kp = score.shape[1]
        local_min = jnp.min(score, axis=1, keepdims=True)
        lane = jax.lax.broadcasted_iota(jnp.int32, score.shape, 1)
        idx_ref[...] = jnp.min(jnp.where(score == local_min, lane, kp),
                               axis=1, keepdims=True)    # first occurrence
    return kernel


def _make_vq_kernel_tiled(emit_dist, matmul_dtype):
    """K is an 'arbitrary' reduction axis with a running (min, argmin) accumulator."""
    def kernel(x_ref, esq_ref, cb_ref, *refs):
        if emit_dist:
            idx_ref, dist_ref, minval_sc, xsq_sc = refs
        else:
            idx_ref, minval_sc = refs
            dist_ref = xsq_sc = None

        k = pl.program_id(1)
        tk = cb_ref.shape[0]

        x = x_ref[...]                                   # (tn, D_pad)
        e = cb_ref[...]                                  # (tk, D_pad)

        @pl.when(k == 0)
        def _init():
            minval_sc[...] = jnp.full(minval_sc.shape, jnp.inf, minval_sc.dtype)
            idx_ref[...] = jnp.zeros(idx_ref.shape, idx_ref.dtype)
            if emit_dist:
                xf = x.astype(jnp.float32)
                xsq_sc[...] = jnp.sum(xf * xf, axis=1, keepdims=True)

        cross = jax.lax.dot_general(
            x.astype(matmul_dtype), e.astype(matmul_dtype),
            dimension_numbers=(((1,), (1,)), ((), ())),
            preferred_element_type=jnp.float32)          # (tn, tk)

        if emit_dist:
            # matches torch.addmm(codebook_sqr + inputs_sqr, x, e.T, alpha=-2, beta=1)
            dist = (xsq_sc[...] + esq_ref[...]) - 2.0 * cross
            dist_ref[...] = dist.astype(dist_ref.dtype)
            score = dist
        else:
            score = esq_ref[...] - 2.0 * cross

        local_min = jnp.min(score, axis=1, keepdims=True)
        lane = jax.lax.broadcasted_iota(jnp.int32, score.shape, 1)
        local_arg = jnp.min(jnp.where(score == local_min, lane, tk),
                            axis=1, keepdims=True) + k * tk

        # strict < keeps the first occurrence across K tiles (torch/jnp argmin)
        better = local_min < minval_sc[...]
        idx_ref[...] = jnp.where(better, local_arg, idx_ref[...])
        minval_sc[...] = jnp.where(better, local_min, minval_sc[...])
    return kernel


def vq_pallas(z_flat, codebook, *, return_distance=True, matmul_dtype=None,
              dist_dtype=jnp.float32, tn=None, tk=None, codebook_resident=None):
    """z_flat: (N, D), codebook: (K, D) -> (indices (N,) int32, dist (N, K) or None)."""
    N, D = z_flat.shape
    K, D2 = codebook.shape
    assert D == D2

    if matmul_dtype is None:
        # f32 for exact torch-parity distances; bf16 (f32-accumulated) otherwise
        matmul_dtype = jnp.float32 if return_distance else jnp.bfloat16

    in_dtype = z_flat.dtype
    cb_dtype = codebook.dtype
    cb_store_dtype = cb_dtype
    if jnp.dtype(matmul_dtype).itemsize < jnp.dtype(cb_dtype).itemsize:
        cb_store_dtype = jnp.dtype(matmul_dtype)   # e.g. bf16-resident codebook

    in_itm = jnp.dtype(in_dtype).itemsize
    cb_itm = jnp.dtype(cb_store_dtype).itemsize
    dist_itm = jnp.dtype(dist_dtype).itemsize

    d_pad = _round_up(D, 128)
    k_lane = _round_up(K, 128)

    if tn is None:
        tn = 512 if return_distance else 1024
    if tk is None:
        tk = 512 if return_distance else 1024
    tn = max(128, min(_round_up(tn, 128), _round_up(N, 128)))
    tk = max(128, min(_round_up(tk, 128), k_lane))

    vmem_budget = _vmem_budget_bytes()

    def _est(resident, tn_, tk_):
        kb = k_lane if resident else tk_
        b = (2 * tn_ * d_pad * in_itm          # x tile (double-buffered)
             + 2 * tn_ * 128 * 4               # idx out (lane-padded)
             + 2 * tn_ * kb * 4)               # in-kernel (tn, K) f32 score
        if resident:
            b += 2 * k_lane * d_pad * cb_itm + 2 * 8 * k_lane * 4
            if return_distance:
                b += 2 * tn_ * k_lane * dist_itm
        else:
            b += 2 * tk_ * d_pad * cb_itm + 2 * 8 * tk_ * 4
            b += 3 * tn_ * 128 * 4             # scratch accumulators
            if return_distance:
                b += 2 * tn_ * tk_ * dist_itm
        return b

    if codebook_resident is None:
        codebook_resident = (k_lane * d_pad * cb_itm <= (8 << 20)
                             and 2 * _est(True, 128, tk) <= vmem_budget)

    # shrink tiles until the (2x-margined) estimate fits the chip's VMEM budget
    while tn > 128 and 2 * _est(codebook_resident, tn, tk) > vmem_budget:
        tn = max(128, _round_up(tn // 2, 8))
    while (not codebook_resident) and tk > 128 and \
            2 * _est(codebook_resident, tn, tk) > vmem_budget:
        tk = max(128, _round_up(tk // 2, 128))

    k_pad = k_lane if codebook_resident else _round_up(k_lane, tk)
    n_pad = _round_up(N, tn)

    # pad only when needed; keep the input dtype (no forced f32 upcast / extra copy)
    if (n_pad, d_pad) == (N, D):
        xp = z_flat
    else:
        xp = jnp.zeros((n_pad, d_pad), in_dtype).at[:N, :D].set(z_flat)
    if (k_pad, d_pad) == (K, D) and jnp.dtype(cb_store_dtype) == jnp.dtype(cb_dtype):
        cbp = codebook
    else:
        cbp = jnp.zeros((k_pad, d_pad), cb_store_dtype).at[:K, :D].set(
            codebook.astype(cb_store_dtype))

    # hoisted codebook norms (lane-dense (1, K_pad)) in f32; padded codebook columns
    # get a large finite sentinel so the argmin never selects them
    e_sqr = jnp.sum(codebook.astype(jnp.float32) ** 2, axis=1)
    e_sqr = jnp.full((k_pad,), 1e30, jnp.float32).at[:K].set(e_sqr)[None, :]

    out_shape = [jax.ShapeDtypeStruct((n_pad, 1), jnp.int32)]

    if codebook_resident:
        grid = (n_pad // tn,)
        in_specs = [
            pl.BlockSpec((tn, d_pad), lambda i: (i, 0)),      # input rows (streamed)
            pl.BlockSpec((1, k_pad), lambda i: (0, 0)),       # e^2 row (resident)
            pl.BlockSpec((k_pad, d_pad), lambda i: (0, 0)),   # codebook (resident)
        ]
        out_specs = [pl.BlockSpec((tn, 1), lambda i: (i, 0))]
        if return_distance:
            out_shape.append(jax.ShapeDtypeStruct((n_pad, k_pad), dist_dtype))
            out_specs.append(pl.BlockSpec((tn, k_pad), lambda i: (i, 0)))
        scratch_shapes = []
        kernel = _make_vq_kernel_resident(return_distance, matmul_dtype)
        dim_sem = ("parallel",)
    else:
        grid = (n_pad // tn, k_pad // tk)
        in_specs = [
            pl.BlockSpec((tn, d_pad), lambda i, k: (i, 0)),   # input rows (resident over K)
            pl.BlockSpec((1, tk), lambda i, k: (0, k)),       # precomputed e^2 tile
            pl.BlockSpec((tk, d_pad), lambda i, k: (k, 0)),   # codebook tile
        ]
        out_specs = [pl.BlockSpec((tn, 1), lambda i, k: (i, 0))]
        scratch_shapes = [pltpu.VMEM((tn, 1), jnp.float32)]   # running min distance
        if return_distance:
            out_shape.append(jax.ShapeDtypeStruct((n_pad, k_pad), dist_dtype))
            out_specs.append(pl.BlockSpec((tn, tk), lambda i, k: (i, k)))
            scratch_shapes.append(pltpu.VMEM((tn, 1), jnp.float32))  # ||x||^2 per row
        kernel = _make_vq_kernel_tiled(return_distance, matmul_dtype)
        dim_sem = ("parallel", "arbitrary")

    vmem_limit = int(min(max(2 * _est(codebook_resident, tn, tk), 32 << 20),
                         vmem_budget))

    outs = pl.pallas_call(
        kernel,
        out_shape=tuple(out_shape),
        grid_spec=pltpu.PrefetchScalarGridSpec(
            num_scalar_prefetch=0,
            grid=grid,
            in_specs=in_specs,
            out_specs=tuple(out_specs),
            scratch_shapes=scratch_shapes,
        ),
        compiler_params=pltpu.CompilerParams(
            dimension_semantics=dim_sem,
            vmem_limit_bytes=vmem_limit,
        ),
    )(xp, e_sqr, cbp)

    if return_distance:
        idx, dist = outs
        return idx[:N, 0], dist[:N, :K]
    return outs[0][:N, 0], None


class VQEmbedding:
    """JAX/Pallas port of the PyTorch VQEmbedding module (forward pass only)."""

    def __init__(self, K, D, key, center=None):
        # nn.Embedding(K, D) with weight.data.uniform_(-1/K, 1/K)
        self.K = K
        self.D = D
        self.weight = jax.random.uniform(
            key, (K, D), dtype=jnp.float32, minval=-1.0 / K, maxval=1.0 / K)
        self.center = center
        self.distance = None

    def forward(self, z_e_x):
        # z_e_x: (B, D, H, W) NCHW, like the PyTorch module
        B, D, H, W = z_e_x.shape
        assert D == self.D
        z_flat = jnp.transpose(z_e_x, (0, 2, 3, 1)).reshape(-1, D)   # (B*H*W, D)
        codebook = self.center if self.center is not None else self.weight
        indices, distance = vq_pallas(z_flat, codebook, return_distance=True)
        self.distance = distance                                     # (B*H*W, K)
        return indices.reshape(B, H, W)                              # int32 latents


def _vq_reference(z_flat, codebook):
    x_sqr = jnp.sum(z_flat ** 2, axis=1, keepdims=True)
    e_sqr = jnp.sum(codebook ** 2, axis=1)[None, :]
    dist = x_sqr + e_sqr - 2.0 * z_flat @ codebook.T
    return jnp.argmin(dist, axis=1).astype(jnp.int32), dist


if __name__ == "__main__":
    key = jax.random.PRNGKey(0)
    k_w, k_x, k_w2 = jax.random.split(key, 3)

    K, D = 16, 8          # codebook size, embedding dim
    B, H, W = 2, 7, 7     # N = B*H*W = 98 (exercises the N / D padding paths)

    module = VQEmbedding(K, D, k_w)
    z_e_x = jax.random.normal(k_x, (B, D, H, W), dtype=jnp.float32)  # NCHW input

    latents = jax.block_until_ready(module.forward(z_e_x))
    dist = jax.block_until_ready(module.distance)

    z_flat = jnp.transpose(z_e_x, (0, 2, 3, 1)).reshape(-1, D)
    ref_idx, ref_dist = _vq_reference(z_flat, module.weight)
    ref_idx = np.asarray(ref_idx)
    ref_dist = np.asarray(ref_dist)

    # 1) resident-codebook + f32 distance path (torch parity)
    np.testing.assert_array_equal(np.asarray(latents).reshape(-1), ref_idx)
    np.testing.assert_allclose(np.asarray(dist), ref_dist, rtol=1e-5, atol=1e-5)
    assert latents.shape == (B, H, W) and latents.dtype == jnp.int32

    # 2) resident, latents-only fast path (bf16 MXU): indices must be (near-)optimal
    idx_fast, no_dist = vq_pallas(z_flat, module.weight, return_distance=False)
    idx_fast = np.asarray(jax.block_until_ready(idx_fast))
    assert no_dist is None
    assert idx_fast.dtype == np.int32 and idx_fast.min() >= 0 and idx_fast.max() < K
    chosen = ref_dist[np.arange(ref_dist.shape[0]), idx_fast]
    assert np.all(chosen <= ref_dist.min(axis=1) + 1e-2)   # bf16 tie tolerance

    # 3) forced tiled path (multi K-tile reduction) with f32 distance parity
    K2 = 300
    cb2 = jax.random.uniform(k_w2, (K2, D), jnp.float32,
                             minval=-1.0 / K2, maxval=1.0 / K2)
    idx_t, dist_t = vq_pallas(z_flat, cb2, return_distance=True,
                              codebook_resident=False, tk=128,
                              matmul_dtype=jnp.float32)
    idx_t = np.asarray(jax.block_until_ready(idx_t))
    ref_idx2, ref_dist2 = _vq_reference(z_flat, cb2)
    np.testing.assert_array_equal(idx_t, np.asarray(ref_idx2))
    np.testing.assert_allclose(np.asarray(dist_t), np.asarray(ref_dist2),
                               rtol=1e-5, atol=1e-5)

    # 4) forced tiled, latents-only path (f32 for exact argmin check)
    idx_t2, _ = vq_pallas(z_flat, cb2, return_distance=False,
                          codebook_resident=False, tk=128,
                          matmul_dtype=jnp.float32)
    np.testing.assert_array_equal(np.asarray(jax.block_until_ready(idx_t2)),
                                  np.asarray(ref_idx2))

    print("KERNEL_OK")
</pallas_src>

<mosaic_0001>
module attributes {stable_mosaic.version = 11 : i64} {
  func.func @kernel(%arg0: i32, %arg1: memref<128x128xf32, #tpu.memory_space<vmem>>, %arg2: memref<1x128xf32, #tpu.memory_space<vmem>>, %arg3: memref<128x128xf32, #tpu.memory_space<vmem>>, %arg4: memref<128x1xi32, #tpu.memory_space<vmem>>, %arg5: memref<128x128xf32, #tpu.memory_space<vmem>>) attributes {dimension_semantics = [#tpu.dimension_semantics<parallel>], iteration_bounds = array<i64: 1>, scalar_prefetch = 0 : i64, scratch_operands = 0 : i64, tpu.core_type = #tpu.core_type<tc>, window_params = [{transform_indices = @transform_0, window_bounds = array<i64: 128, 128>}, {pipeline_mode = #tpu.pipeline_mode<synchronous>, transform_indices = @transform_1, window_bounds = array<i64: 1, 128>}, {pipeline_mode = #tpu.pipeline_mode<synchronous>, transform_indices = @transform_2, window_bounds = array<i64: 128, 128>}, {transform_indices = @transform_3, window_bounds = array<i64: 128, 1>}, {transform_indices = @transform_4, window_bounds = array<i64: 128, 128>}]} {
    %c0 = arith.constant 0 : index
    %c0_0 = arith.constant 0 : index
    %0 = vector.load %arg1[%c0, %c0_0] : memref<128x128xf32, #tpu.memory_space<vmem>>, vector<128x128xf32>
    %c0_1 = arith.constant 0 : index
    %c0_2 = arith.constant 0 : index
    %1 = vector.load %arg3[%c0_1, %c0_2] : memref<128x128xf32, #tpu.memory_space<vmem>>, vector<128x128xf32>
    %cst = arith.constant dense<0.000000e+00> : vector<128x128xf32>
    %2 = tpu.matmul %0, %1, %cst {dimension_numbers = #tpu.dot_dimension_numbers<[1], [1], [0], [0], [0, 0, 1, 0], [], []>} : vector<128x128xf32>, vector<128x128xf32>, vector<128x128xf32> -> vector<128x128xf32>
    %3 = arith.mulf %0, %0 : vector<128x128xf32>
    %cst_3 = arith.constant dense<0.000000e+00> : vector<128xf32>
    %4 = vector.multi_reduction <add>, %3, %cst_3 [1] : vector<128x128xf32> to vector<128xf32>
    %5 = vector.shape_cast %4 : vector<128xf32> to vector<128x1xf32>
    %c0_4 = arith.constant 0 : index
    %c0_5 = arith.constant 0 : index
    %6 = vector.load %arg2[%c0_4, %c0_5] : memref<1x128xf32, #tpu.memory_space<vmem>>, vector<1x128xf32>
    %7 = vector.broadcast %5 : vector<128x1xf32> to vector<128x128xf32>
    %8 = vector.broadcast %6 : vector<1x128xf32> to vector<128x128xf32>
    %9 = arith.addf %7, %8 : vector<128x128xf32>
    %cst_6 = arith.constant 2.000000e+00 : f32
    %10 = vector.broadcast %cst_6 : f32 to vector<128x128xf32>
    %11 = arith.mulf %10, %2 : vector<128x128xf32>
    %12 = arith.subf %9, %11 : vector<128x128xf32>
    %c0_7 = arith.constant 0 : index
    %c0_8 = arith.constant 0 : index
    %13 = vector.load %arg5[%c0_7, %c0_8] : memref<128x128xf32, #tpu.memory_space<vmem>>, vector<128x128xf32>
    tpu.vector_store %arg5[%c0_7, %c0_8], %12 {strides = array<i32>} : memref<128x128xf32, #tpu.memory_space<vmem>>, vector<128x128xf32>,
    %cst_9 = arith.constant dense<0x7F800000> : vector<128xf32>
    %14 = vector.multi_reduction <minimumf>, %12, %cst_9 [1] : vector<128x128xf32> to vector<128xf32>
    %15 = vector.shape_cast %14 : vector<128xf32> to vector<128x1xf32>
    %16 = tpu.iota {dimensions = array<i32: 1>} : vector<128x128xi32>
    %17 = vector.broadcast %15 : vector<128x1xf32> to vector<128x128xf32>
    %18 = arith.cmpf oeq, %12, %17 : vector<128x128xf32>
    %c128_i32 = arith.constant 128 : i32
    %19 = vector.broadcast %c128_i32 : i32 to vector<128x128xi32>
    %20 = arith.select %18, %16, %19 : vector<128x128xi1>, vector<128x128xi32>
    %cst_10 = arith.constant dense<2147483647> : vector<128xi32>
    %21 = vector.multi_reduction <minsi>, %20, %cst_10 [1] : vector<128x128xi32> to vector<128xi32>
    %22 = vector.shape_cast %21 : vector<128xi32> to vector<128x1xi32>
    %c0_11 = arith.constant 0 : index
    %c0_12 = arith.constant 0 : index
    %23 = vector.load %arg4[%c0_11, %c0_12] : memref<128x1xi32, #tpu.memory_space<vmem>>, vector<128x1xi32>
    tpu.vector_store %arg4[%c0_11, %c0_12], %22 {strides = array<i32>} : memref<128x1xi32, #tpu.memory_space<vmem>>, vector<128x1xi32>,
    return
  }
  func.func @transform_0(%arg0: i32) -> (i32, i32) {
    %c0_i32 = arith.constant 0 : i32
    %c0_i32_0 = arith.constant 0 : i32
    return %arg0, %c0_i32 : i32, i32
  }
  func.func @transform_1(%arg0: i32) -> (i32, i32) {
    %c0_i32 = arith.constant 0 : i32
    %c0_i32_0 = arith.constant 0 : i32
    %c0_i32_1 = arith.constant 0 : i32
    return %c0_i32, %c0_i32_0 : i32, i32
  }
  func.func @transform_2(%arg0: i32) -> (i32, i32) {
    %c0_i32 = arith.constant 0 : i32
    %c0_i32_0 = arith.constant 0 : i32
    %c0_i32_1 = arith.constant 0 : i32
    return %c0_i32, %c0_i32_0 : i32, i32
  }
  func.func @transform_3(%arg0: i32) -> (i32, i32) {
    %c0_i32 = arith.constant 0 : i32
    %c0_i32_0 = arith.constant 0 : i32
    return %arg0, %c0_i32 : i32, i32
  }
  func.func @transform_4(%arg0: i32) -> (i32, i32) {
    %c0_i32 = arith.constant 0 : i32
    %c0_i32_0 = arith.constant 0 : i32
    return %arg0, %c0_i32 : i32, i32
  }
}

</mosaic_0001>

<llo_original>
// kernel: tpu_custom_call.1
$region0: #{tpu_custom_call.1}
  #allocation0 [shape = 'u32[]', space=smem, size = 0x4, offset = 0x4, fixed_abs, tag = 'smem constant byte address 0x4 - core index']
  #allocation1 [shape = 'u32[144,128]{1,0:T(1,128)}', space=vmem, size = 0x12000, scoped, tag = 'internal scratch']
  %s0 = inlined_call_operand.hbm [shape: f32[128,128], index: 0, kind: input, shape index: {}]
  %s1 = inlined_call_operand.vmem [shape: f32[1,128], index: 1, kind: input, shape index: {}]
  %s2 = inlined_call_operand.hbm [shape: f32[128,128], index: 2, kind: input, shape index: {}]
  %s3 = inlined_call_operand.vmem [shape: s32[128,1], index: 3, kind: output, shape index: {0}]
  %s4 = inlined_call_operand.hbm [shape: f32[128,128], index: 4, kind: output, shape index: {1}]
  %5 = xla_tuple %s3, %s4
  %s6 = sld [smem:[#allocation0]]
  $region38: #{tpu_custom_call.1} parent=0
    _
  %s8 = ssub.s32 1, %s6
  %s9 = scalar_select 0, %s8, %s6
  $region1: #{tpu_custom_call.1} parent=0
    #allocation2 [shape = 'u8[65536]{0}', space=vmem, size = 0x10000, scoped, tag = 'input window, operand 0, single buffered']
    #allocation3 [shape = 's32[1]{0}', space=sflag, size = 0x4, scoped, tag = 'scoped memory for tpu_custom_call.1']
    #allocation4 [shape = 's32[1]{0}', space=sflag, size = 0x4, scoped, tag = 'scoped memory for tpu_custom_call.1']
    #allocation5 [shape = 'u8[65536]{0}', space=vmem, size = 0x10000, scoped, tag = 'input window, operand 2, single buffered']
    #allocation6 [shape = 's32[1]{0}', space=sflag, size = 0x4, scoped, tag = 'scoped memory for tpu_custom_call.1']
    #allocation7 [shape = 'u8[65536]{0}', space=vmem, size = 0x10000, scoped, tag = 'output window, operand 1, single buffered']
    %10 = vsyncpa [#allocation3], 0
    %11 = vsyncpa [#allocation6], 0
    %12 = vsyncpa [#allocation4], 0
    // Predicated region
    $region2: #{tpu_custom_call.1} parent=1 // pred_check
      _
    $region3: #{tpu_custom_call.1} parent=1 // pred_check_branch
      %14 = sbr.rel (0) target = $region5
    $region4: #{tpu_custom_call.1} parent=1 // pred_region
      %s16 = ssub.s32 2048, 2048
      %17 = vsyncadd [#allocation3], %s16
      %s18 = sshll.u32 [#allocation2], 4
      %s19 = int_to_ptr.vmem [resolvable:$true] %s18
      %24 = dma.hbm_to_vmem [thread:$0]  %s0, 2048, %s19, [#allocation3], 128, 128, 8
    $region5: #{tpu_custom_call.1} parent=1 // pred_fallthru
      _
    // Predicated region
    $region6: #{tpu_custom_call.1} parent=1 // pred_check
      _
    $region7: #{tpu_custom_call.1} parent=1 // pred_check_branch
      %26 = sbr.rel (0) target = $region9
    $region8: #{tpu_custom_call.1} parent=1 // pred_region
      _
    $region9: #{tpu_custom_call.1} parent=1 // pred_fallthru
      _
    // Predicated region
    $region10: #{tpu_custom_call.1} parent=1 // pred_check
      _
    $region11: #{tpu_custom_call.1} parent=1 // pred_check_branch
      %28 = sbr.rel (0) target = $region13
    $region12: #{tpu_custom_call.1} parent=1 // pred_region
      %s30 = ssub.s32 2048, 2048
      %31 = vsyncadd [#allocation6], %s30
      %s32 = sshll.u32 [#allocation5], 4
      %s33 = int_to_ptr.vmem [resolvable:$true] %s32
      %38 = dma.hbm_to_vmem [thread:$0]  %s2, 2048, %s33, [#allocation6], 128, 128, 8
    $region13: #{tpu_custom_call.1} parent=1 // pred_fallthru
      _
    // Predicated region
    $region14: #{tpu_custom_call.1} parent=1 // pred_check
      _
    $region15: #{tpu_custom_call.1} parent=1 // pred_check_branch
      %40 = sbr.rel (0) target = $region17
    $region16: #{tpu_custom_call.1} parent=1 // pred_region
      %41 = dma.done [#allocation3], 2048
    $region17: #{tpu_custom_call.1} parent=1 // pred_fallthru
      _
    // Predicated region
    $region18: #{tpu_custom_call.1} parent=1 // pred_check
      _
    $region19: #{tpu_custom_call.1} parent=1 // pred_check_branch
      %43 = sbr.rel (0) target = $region21
    $region20: #{tpu_custom_call.1} parent=1 // pred_region
      %44 = dma.done [#allocation6], 2048
    $region21: #{tpu_custom_call.1} parent=1 // pred_fallthru
      _
    %v45 = vld [vmem:[#allocation2] sm:$0xff]
    %v46 = vld [vmem:[#allocation2 + $0x8] sm:$0xff]
    %v47 = vld [vmem:[#allocation2 + $0x10] sm:$0xff]
    %v48 = vld [vmem:[#allocation2 + $0x18] sm:$0xff]
    %v49 = vld [vmem:[#allocation2 + $0x20] sm:$0xff]
    %v50 = vld [vmem:[#allocation2 + $0x28] sm:$0xff]
    %v51 = vld [vmem:[#allocation2 + $0x30] sm:$0xff]
    %v52 = vld [vmem:[#allocation2 + $0x38] sm:$0xff]
    %v53 = vld [vmem:[#allocation2 + $0x40] sm:$0xff]
    %v54 = vld [vmem:[#allocation2 + $0x48] sm:$0xff]
    %v55 = vld [vmem:[#allocation2 + $0x50] sm:$0xff]
    %v56 = vld [vmem:[#allocation2 + $0x58] sm:$0xff]
    %v57 = vld [vmem:[#allocation2 + $0x60] sm:$0xff]
    %v58 = vld [vmem:[#allocation2 + $0x68] sm:$0xff]
    %v59 = vld [vmem:[#allocation2 + $0x70] sm:$0xff]
    %v60 = vld [vmem:[#allocation2 + $0x78] sm:$0xff]
    %v61 = vld [vmem:[#allocation5] sm:$0xff]
    %v62 = vld [vmem:[#allocation5 + $0x8] sm:$0xff]
    %v63 = vld [vmem:[#allocation5 + $0x10] sm:$0xff]
    %v64 = vld [vmem:[#allocation5 + $0x18] sm:$0xff]
    %v65 = vld [vmem:[#allocation5 + $0x20] sm:$0xff]
    %v66 = vld [vmem:[#allocation5 + $0x28] sm:$0xff]
    %v67 = vld [vmem:[#allocation5 + $0x30] sm:$0xff]
    %v68 = vld [vmem:[#allocation5 + $0x38] sm:$0xff]
    %v69 = vld [vmem:[#allocation5 + $0x40] sm:$0xff]
    %v70 = vld [vmem:[#allocation5 + $0x48] sm:$0xff]
    %v71 = vld [vmem:[#allocation5 + $0x50] sm:$0xff]
    %v72 = vld [vmem:[#allocation5 + $0x58] sm:$0xff]
    %v73 = vld [vmem:[#allocation5 + $0x60] sm:$0xff]
    %v74 = vld [vmem:[#allocation5 + $0x68] sm:$0xff]
    %v75 = vld [vmem:[#allocation5 + $0x70] sm:$0xff]
    %v76 = vld [vmem:[#allocation5 + $0x78] sm:$0xff]
    %77 = vmatprep.subr.mxu0 0.0
    %78 = vmatpush1.xpose.msra.mxu0 %v61
    %79 = vmatprep.subr.mxu0 0.0
    %80 = vmatpush1.xpose.msra.mxu0 %v62
    %81 = vmatprep.subr.mxu0 0.0
    %82 = vmatpush1.xpose.msra.mxu0 %v63
    %83 = vmatprep.subr.mxu0 0.0
    %84 = vmatpush1.xpose.msra.mxu0 %v64
    %85 = vmatprep.subr.mxu0 0.0
    %86 = vmatpush1.xpose.msra.mxu0 %v65
    %87 = vmatprep.subr.mxu0 0.0
    %88 = vmatpush1.xpose.msra.mxu0 %v66
    %89 = vmatprep.subr.mxu0 0.0
    %90 = vmatpush1.xpose.msra.mxu0 %v67
    %91 = vmatprep.subr.mxu0 0.0
    %92 = vmatpush1.xpose.msra.mxu0 %v68
    %93 = vmatprep.subr.mxu0 0.0
    %94 = vmatpush1.xpose.msra.mxu0 %v69
    %95 = vmatprep.subr.mxu0 0.0
    %96 = vmatpush1.xpose.msra.mxu0 %v70
    %97 = vmatprep.subr.mxu0 0.0
    %98 = vmatpush1.xpose.msra.mxu0 %v71
    %99 = vmatprep.subr.mxu0 0.0
    %100 = vmatpush1.xpose.msra.mxu0 %v72
    %101 = vmatprep.subr.mxu0 0.0
    %102 = vmatpush1.xpose.msra.mxu0 %v73
    %103 = vmatprep.subr.mxu0 0.0
    %104 = vmatpush1.xpose.msra.mxu0 %v74
    %105 = vmatprep.subr.mxu0 0.0
    %106 = vmatpush1.xpose.msra.mxu0 %v75
    %107 = vmatprep.subr.mxu0 0.0
    %108 = vmatpush1.xpose.msra.mxu0 %v76
    %109 = vmatprep.subr.mxu0 0.0
    %110 = vmatpush1.xpose.msra.mxu0 0.0
    %111 = vmatprep.subr.mxu0 0.0
    %112 = vmatpush1.xpose.msra.mxu0 0.0
    %113 = vmatprep.subr.mxu0 0.0
    %114 = vmatpush1.xpose.msra.mxu0 0.0
    %115 = vmatprep.subr.mxu0 0.0
    %116 = vmatpush1.xpose.msra.mxu0 0.0
    %117 = vmatprep.subr.mxu0 0.0
    %118 = vmatpush1.xpose.msra.mxu0 0.0
    %119 = vmatprep.subr.mxu0 0.0
    %120 = vmatpush1.xpose.msra.mxu0 0.0
    %121 = vmatprep.subr.mxu0 0.0
    %122 = vmatpush1.xpose.msra.mxu0 0.0
    %123 = vmatprep.subr.mxu0 0.0
    %124 = vmatpush1.xpose.msra.mxu0 0.0
    %125 = vmatprep.subr.mxu0 0.0
    %126 = vmatpush1.xpose.msra.mxu0 0.0
    %127 = vmatprep.subr.mxu0 0.0
    %128 = vmatpush1.xpose.msra.mxu0 0.0
    %129 = vmatprep.subr.mxu0 0.0
    %130 = vmatpush1.xpose.msra.mxu0 0.0
    %131 = vmatprep.subr.mxu0 0.0
    %132 = vmatpush1.xpose.msra.mxu0 0.0
    %133 = vmatprep.subr.mxu0 0.0
    %134 = vmatpush1.xpose.msra.mxu0 0.0
    %135 = vmatprep.subr.mxu0 0.0
    %136 = vmatpush1.xpose.msra.mxu0 0.0
    %137 = vmatprep.subr.mxu0 0.0
    %138 = vmatpush1.xpose.msra.mxu0 0.0
    %139 = vmatprep.subr.mxu0 0.0
    %140 = vmatpush1.xpose.msra.mxu0 0.0
    %141 = vmatprep.mubr.f32.mxu0 0.0
    %142 = vmatmul.mubr.f32.gmra.mrb[0].mxu0 %v45
    %v143 = vpop.f32.mrb[0].mxu0
    %v144 = vadd.f32 0.0, %v143
    %v145 = vpop.f32.mrb[0].mxu0
    %146 = vmatprep.mubr.f32.mxu0 0.0
    %147 = vmatmul.mubr.f32.gmra.mrb[0].mxu0 %v46
    %v148 = vpop.f32.mrb[0].mxu0
    %v149 = vadd.f32 0.0, %v148
    %v150 = vpop.f32.mrb[0].mxu0
    %151 = vmatprep.mubr.f32.mxu0 0.0
    %152 = vmatmul.mubr.f32.gmra.mrb[0].mxu0 %v47
    %v153 = vpop.f32.mrb[0].mxu0
    %v154 = vadd.f32 0.0, %v153
    %v155 = vpop.f32.mrb[0].mxu0
    %156 = vmatprep.mubr.f32.mxu0 0.0
    %157 = vmatmul.mubr.f32.gmra.mrb[0].mxu0 %v48
    %v158 = vpop.f32.mrb[0].mxu0
    %v159 = vadd.f32 0.0, %v158
    %v160 = vpop.f32.mrb[0].mxu0
    %161 = vmatprep.mubr.f32.mxu0 0.0
    %162 = vmatmul.mubr.f32.gmra.mrb[0].mxu0 %v49
    %v163 = vpop.f32.mrb[0].mxu0
    %v164 = vadd.f32 0.0, %v163
    %v165 = vpop.f32.mrb[0].mxu0
    %166 = vmatprep.mubr.f32.mxu0 0.0
    %167 = vmatmul.mubr.f32.gmra.mrb[0].mxu0 %v50
    %v168 = vpop.f32.mrb[0].mxu0
    %v169 = vadd.f32 0.0, %v168
    %v170 = vpop.f32.mrb[0].mxu0
    %171 = vmatprep.mubr.f32.mxu0 0.0
    %172 = vmatmul.mubr.f32.gmra.mrb[0].mxu0 %v51
    %v173 = vpop.f32.mrb[0].mxu0
    %v174 = vadd.f32 0.0, %v173
    %v175 = vpop.f32.mrb[0].mxu0
    %176 = vmatprep.mubr.f32.mxu0 0.0
    %177 = vmatmul.mubr.f32.gmra.mrb[0].mxu0 %v52
    %v178 = vpop.f32.mrb[0].mxu0
    %v179 = vadd.f32 0.0, %v178
    %v180 = vpop.f32.mrb[0].mxu0
    %181 = vmatprep.mubr.f32.mxu0 0.0
    %182 = vmatmul.mubr.f32.gmra.mrb[0].mxu0 %v53
    %v183 = vpop.f32.mrb[0].mxu0
    %v184 = vadd.f32 0.0, %v183
    %v185 = vpop.f32.mrb[0].mxu0
    %186 = vmatprep.mubr.f32.mxu0 0.0
    %187 = vmatmul.mubr.f32.gmra.mrb[0].mxu0 %v54
    %v188 = vpop.f32.mrb[0].mxu0
    %v189 = vadd.f32 0.0, %v188
    %v190 = vpop.f32.mrb[0].mxu0
    %191 = vmatprep.mubr.f32.mxu0 0.0
    %192 = vmatmul.mubr.f32.gmra.mrb[0].mxu0 %v55
    %v193 = vpop.f32.mrb[0].mxu0
    %v194 = vadd.f32 0.0, %v193
    %v195 = vpop.f32.mrb[0].mxu0
    %196 = vmatprep.mubr.f32.mxu0 0.0
    %197 = vmatmul.mubr.f32.gmra.mrb[0].mxu0 %v56
    %v198 = vpop.f32.mrb[0].mxu0
    %v199 = vadd.f32 0.0, %v198
    %v200 = vpop.f32.mrb[0].mxu0
    %201 = vmatprep.mubr.f32.mxu0 0.0
    %202 = vmatmul.mubr.f32.gmra.mrb[0].mxu0 %v57
    %v203 = vpop.f32.mrb[0].mxu0
    %v204 = vadd.f32 0.0, %v203
    %v205 = vpop.f32.mrb[0].mxu0
    %206 = vmatprep.mubr.f32.mxu0 0.0
    %207 = vmatmul.mubr.f32.gmra.mrb[0].mxu0 %v58
    %v208 = vpop.f32.mrb[0].mxu0
    %v209 = vadd.f32 0.0, %v208
    %v210 = vpop.f32.mrb[0].mxu0
    %211 = vmatprep.mubr.f32.mxu0 0.0
    %212 = vmatmul.mubr.f32.gmra.mrb[0].mxu0 %v59
    %v213 = vpop.f32.mrb[0].mxu0
    %v214 = vadd.f32 0.0, %v213
    %v215 = vpop.f32.mrb[0].mxu0
    %216 = vmatprep.mubr.f32.mxu0 0.0
    %217 = vmatmul.mubr.f32.gmra.mrb[0].mxu0 %v60
    %v218 = vpop.f32.mrb[0].mxu0
    %v219 = vadd.f32 0.0, %v218
    %v220 = vpop.f32.mrb[0].mxu0
    %221 = vdwg.mxu0
    %v222 = vmul.f32 %v45, %v45
    %v223 = vmul.f32 %v46, %v46
    %v224 = vmul.f32 %v47, %v47
    %v225 = vmul.f32 %v48, %v48
    %v226 = vmul.f32 %v49, %v49
    %v227 = vmul.f32 %v50, %v50
    %v228 = vmul.f32 %v51, %v51
    %v229 = vmul.f32 %v52, %v52
    %v230 = vmul.f32 %v53, %v53
    %v231 = vmul.f32 %v54, %v54
    %v232 = vmul.f32 %v55, %v55
    %v233 = vmul.f32 %v56, %v56
    %v234 = vmul.f32 %v57, %v57
    %v235 = vmul.f32 %v58, %v58
    %v236 = vmul.f32 %v59, %v59
    %v237 = vmul.f32 %v60, %v60
    %238 = vadd.xlane.f32.xlu0 %v222
    %v239 = vpop.xlane.xlu0 %238
    %240 = vadd.xlane.f32.xlu0 %v223
    %v241 = vpop.xlane.xlu0 %240
    %242 = vadd.xlane.f32.xlu0 %v224
    %v243 = vpop.xlane.xlu0 %242
    %244 = vadd.xlane.f32.xlu0 %v225
    %v245 = vpop.xlane.xlu0 %244
    %246 = vadd.xlane.f32.xlu0 %v226
    %v247 = vpop.xlane.xlu0 %246
    %248 = vadd.xlane.f32.xlu0 %v227
    %v249 = vpop.xlane.xlu0 %248
    %250 = vadd.xlane.f32.xlu0 %v228
    %v251 = vpop.xlane.xlu0 %250
    %252 = vadd.xlane.f32.xlu0 %v229
    %v253 = vpop.xlane.xlu0 %252
    %254 = vadd.xlane.f32.xlu0 %v230
    %v255 = vpop.xlane.xlu0 %254
    %256 = vadd.xlane.f32.xlu0 %v231
    %v257 = vpop.xlane.xlu0 %256
    %258 = vadd.xlane.f32.xlu0 %v232
    %v259 = vpop.xlane.xlu0 %258
    %260 = vadd.xlane.f32.xlu0 %v233
    %v261 = vpop.xlane.xlu0 %260
    %262 = vadd.xlane.f32.xlu0 %v234
    %v263 = vpop.xlane.xlu0 %262
    %264 = vadd.xlane.f32.xlu0 %v235
    %v265 = vpop.xlane.xlu0 %264
    %266 = vadd.xlane.f32.xlu0 %v236
    %v267 = vpop.xlane.xlu0 %266
    %268 = vadd.xlane.f32.xlu0 %v237
    %v269 = vpop.xlane.xlu0 %268
    %v270 = vld [vmem:[%s1] sm:$0x1]
    %v272 = vlaneseq
    %v273 = vshrl.u32 %v272, 7
    %v274 = vsub.s32 0, %v273
    %v275 = vrot.slane %v270, %v274
    %v277 = vadd.f32 %v239, %v275
    %v278 = vadd.f32 %v241, %v275
    %v279 = vadd.f32 %v243, %v275
    %v280 = vadd.f32 %v245, %v275
    %v281 = vadd.f32 %v247, %v275
    %v282 = vadd.f32 %v249, %v275
    %v283 = vadd.f32 %v251, %v275
    %v284 = vadd.f32 %v253, %v275
    %v285 = vadd.f32 %v255, %v275
    %v286 = vadd.f32 %v257, %v275
    %v287 = vadd.f32 %v259, %v275
    %v288 = vadd.f32 %v261, %v275
    %v289 = vadd.f32 %v263, %v275
    %v290 = vadd.f32 %v265, %v275
    %v291 = vadd.f32 %v267, %v275
    %v292 = vadd.f32 %v269, %v275
    %v293 = vmul.f32 %v144, 2.0
    %v294 = vmul.f32 %v149, 2.0
    %v295 = vmul.f32 %v154, 2.0
    %v296 = vmul.f32 %v159, 2.0
    %v297 = vmul.f32 %v164, 2.0
    %v298 = vmul.f32 %v169, 2.0
    %v299 = vmul.f32 %v174, 2.0
    %v300 = vmul.f32 %v179, 2.0
    %v301 = vmul.f32 %v184, 2.0
    %v302 = vmul.f32 %v189, 2.0
    %v303 = vmul.f32 %v194, 2.0
    %v304 = vmul.f32 %v199, 2.0
    %v305 = vmul.f32 %v204, 2.0
    %v306 = vmul.f32 %v209, 2.0
    %v307 = vmul.f32 %v214, 2.0
    %v308 = vmul.f32 %v219, 2.0
    %v309 = vsub.f32 %v277, %v293
    %v310 = vsub.f32 %v278, %v294
    %v311 = vsub.f32 %v279, %v295
    %v312 = vsub.f32 %v280, %v296
    %v313 = vsub.f32 %v281, %v297
    %v314 = vsub.f32 %v282, %v298
    %v315 = vsub.f32 %v283, %v299
    %v316 = vsub.f32 %v284, %v300
    %v317 = vsub.f32 %v285, %v301
    %v318 = vsub.f32 %v286, %v302
    %v319 = vsub.f32 %v287, %v303
    %v320 = vsub.f32 %v288, %v304
    %v321 = vsub.f32 %v289, %v305
    %v322 = vsub.f32 %v290, %v306
    %v323 = vsub.f32 %v291, %v307
    %v324 = vsub.f32 %v292, %v308
    %325 = vst [vmem:[#allocation7] sm:$0xff] %v309
    %326 = vst [vmem:[#allocation7 + $0x8] sm:$0xff] %v310
    %327 = vst [vmem:[#allocation7 + $0x10] sm:$0xff] %v311
    %328 = vst [vmem:[#allocation7 + $0x18] sm:$0xff] %v312
    %329 = vst [vmem:[#allocation7 + $0x20] sm:$0xff] %v313
    %330 = vst [vmem:[#allocation7 + $0x28] sm:$0xff] %v314
    %331 = vst [vmem:[#allocation7 + $0x30] sm:$0xff] %v315
    %332 = vst [vmem:[#allocation7 + $0x38] sm:$0xff] %v316
    %333 = vst [vmem:[#allocation7 + $0x40] sm:$0xff] %v317
    %334 = vst [vmem:[#allocation7 + $0x48] sm:$0xff] %v318
    %335 = vst [vmem:[#allocation7 + $0x50] sm:$0xff] %v319
    %336 = vst [vmem:[#allocation7 + $0x58] sm:$0xff] %v320
    %337 = vst [vmem:[#allocation7 + $0x60] sm:$0xff] %v321
    %338 = vst [vmem:[#allocation7 + $0x68] sm:$0xff] %v322
    %339 = vst [vmem:[#allocation7 + $0x70] sm:$0xff] %v323
    %340 = vst [vmem:[#allocation7 + $0x78] sm:$0xff] %v324
    %341 = vmin.xlane.f32.xlu0 %v309
    %v342 = vpop.xlane.xlu0 %341
    %343 = vmin.xlane.f32.xlu0 %v310
    %v344 = vpop.xlane.xlu0 %343
    %345 = vmin.xlane.f32.xlu0 %v311
    %v346 = vpop.xlane.xlu0 %345
    %347 = vmin.xlane.f32.xlu0 %v312
    %v348 = vpop.xlane.xlu0 %347
    %349 = vmin.xlane.f32.xlu0 %v313
    %v350 = vpop.xlane.xlu0 %349
    %351 = vmin.xlane.f32.xlu0 %v314
    %v352 = vpop.xlane.xlu0 %351
    %353 = vmin.xlane.f32.xlu0 %v315
    %v354 = vpop.xlane.xlu0 %353
    %355 = vmin.xlane.f32.xlu0 %v316
    %v356 = vpop.xlane.xlu0 %355
    %357 = vmin.xlane.f32.xlu0 %v317
    %v358 = vpop.xlane.xlu0 %357
    %359 = vmin.xlane.f32.xlu0 %v318
    %v360 = vpop.xlane.xlu0 %359
    %361 = vmin.xlane.f32.xlu0 %v319
    %v362 = vpop.xlane.xlu0 %361
    %363 = vmin.xlane.f32.xlu0 %v320
    %v364 = vpop.xlane.xlu0 %363
    %365 = vmin.xlane.f32.xlu0 %v321
    %v366 = vpop.xlane.xlu0 %365
    %367 = vmin.xlane.f32.xlu0 %v322
    %v368 = vpop.xlane.xlu0 %367
    %369 = vmin.xlane.f32.xlu0 %v323
    %v370 = vpop.xlane.xlu0 %369
    %371 = vmin.xlane.f32.xlu0 %v324
    %v372 = vpop.xlane.xlu0 %371
    %v373 = vlaneseq
    %v374 = vand.u32 %v373, 127
    %vm375 = vcmp.eq.f32.partialorder %v309, %v342
    %vm376 = vcmp.eq.f32.partialorder %v310, %v344
    %vm377 = vcmp.eq.f32.partialorder %v311, %v346
    %vm378 = vcmp.eq.f32.partialorder %v312, %v348
    %vm379 = vcmp.eq.f32.partialorder %v313, %v350
    %vm380 = vcmp.eq.f32.partialorder %v314, %v352
    %vm381 = vcmp.eq.f32.partialorder %v315, %v354
    %vm382 = vcmp.eq.f32.partialorder %v316, %v356
    %vm383 = vcmp.eq.f32.partialorder %v317, %v358
    %vm384 = vcmp.eq.f32.partialorder %v318, %v360
    %vm385 = vcmp.eq.f32.partialorder %v319, %v362
    %vm386 = vcmp.eq.f32.partialorder %v320, %v364
    %vm387 = vcmp.eq.f32.partialorder %v321, %v366
    %vm388 = vcmp.eq.f32.partialorder %v322, %v368
    %vm389 = vcmp.eq.f32.partialorder %v323, %v370
    %vm390 = vcmp.eq.f32.partialorder %v324, %v372
    %v391 = vsel %vm375, %v374, 128
    %v392 = vsel %vm376, %v374, 128
    %v393 = vsel %vm377, %v374, 128
    %v394 = vsel %vm378, %v374, 128
    %v395 = vsel %vm379, %v374, 128
    %v396 = vsel %vm380, %v374, 128
    %v397 = vsel %vm381, %v374, 128
    %v398 = vsel %vm382, %v374, 128
    %v399 = vsel %vm383, %v374, 128
    %v400 = vsel %vm384, %v374, 128
    %v401 = vsel %vm385, %v374, 128
    %v402 = vsel %vm386, %v374, 128
    %v403 = vsel %vm387, %v374, 128
    %v404 = vsel %vm388, %v374, 128
    %v405 = vsel %vm389, %v374, 128
    %v406 = vsel %vm390, %v374, 128
    %v407 = vand.u32 %v391, 65535
    %v408 = vshra.s32 %v391, 16
    %v409 = vcvt.s32.f32 %v407
    %v410 = vcvt.s32.f32 %v408
    %411 = vmin.xlane.f32.xlu0 %v410
    %v412 = vpop.xlane.xlu0 %411
    %vm413 = vcmp.eq.f32.partialorder %v410, %v412
    %v414 = vsel %vm413, %v409, inf
    %415 = vmin.xlane.f32.xlu0 %v414
    %v416 = vpop.xlane.xlu0 %415
    %v417 = vcvt.f32.s32 %v416
    %v418 = vcvt.f32.s32 %v412
    %v419 = vshll.u32 %v418, 16
    %v420 = vadd.s32 %v419, %v417
    %v421 = vand.u32 %v392, 65535
    %v422 = vshra.s32 %v392, 16
    %v423 = vcvt.s32.f32 %v421
    %v424 = vcvt.s32.f32 %v422
    %425 = vmin.xlane.f32.xlu0 %v424
    %v426 = vpop.xlane.xlu0 %425
    %vm427 = vcmp.eq.f32.partialorder %v424, %v426
    %v428 = vsel %vm427, %v423, inf
    %429 = vmin.xlane.f32.xlu0 %v428
    %v430 = vpop.xlane.xlu0 %429
    %v431 = vcvt.f32.s32 %v430
    %v432 = vcvt.f32.s32 %v426
    %v433 = vshll.u32 %v432, 16
    %v434 = vadd.s32 %v433, %v431
    %v435 = vand.u32 %v393, 65535
    %v436 = vshra.s32 %v393, 16
    %v437 = vcvt.s32.f32 %v435
    %v438 = vcvt.s32.f32 %v436
    %439 = vmin.xlane.f32.xlu0 %v438
    %v440 = vpop.xlane.xlu0 %439
    %vm441 = vcmp.eq.f32.partialorder %v438, %v440
    %v442 = vsel %vm441, %v437, inf
    %443 = vmin.xlane.f32.xlu0 %v442
    %v444 = vpop.xlane.xlu0 %443
    %v445 = vcvt.f32.s32 %v444
    %v446 = vcvt.f32.s32 %v440
    %v447 = vshll.u32 %v446, 16
    %v448 = vadd.s32 %v447, %v445
    %v449 = vand.u32 %v394, 65535
    %v450 = vshra.s32 %v394, 16
    %v451 = vcvt.s32.f32 %v449
    %v452 = vcvt.s32.f32 %v450
    %453 = vmin.xlane.f32.xlu0 %v452
    %v454 = vpop.xlane.xlu0 %453
    %vm455 = vcmp.eq.f32.partialorder %v452, %v454
    %v456 = vsel %vm455, %v451, inf
    %457 = vmin.xlane.f32.xlu0 %v456
    %v458 = vpop.xlane.xlu0 %457
    %v459 = vcvt.f32.s32 %v458
    %v460 = vcvt.f32.s32 %v454
    %v461 = vshll.u32 %v460, 16
    %v462 = vadd.s32 %v461, %v459
    %v463 = vand.u32 %v395, 65535
    %v464 = vshra.s32 %v395, 16
    %v465 = vcvt.s32.f32 %v463
    %v466 = vcvt.s32.f32 %v464
    %467 = vmin.xlane.f32.xlu0 %v466
    %v468 = vpop.xlane.xlu0 %467
    %vm469 = vcmp.eq.f32.partialorder %v466, %v468
    %v470 = vsel %vm469, %v465, inf
    %471 = vmin.xlane.f32.xlu0 %v470
    %v472 = vpop.xlane.xlu0 %471
    %v473 = vcvt.f32.s32 %v472
    %v474 = vcvt.f32.s32 %v468
    %v475 = vshll.u32 %v474, 16
    %v476 = vadd.s32 %v475, %v473
    %v477 = vand.u32 %v396, 65535
    %v478 = vshra.s32 %v396, 16
    %v479 = vcvt.s32.f32 %v477
    %v480 = vcvt.s32.f32 %v478
    %481 = vmin.xlane.f32.xlu0 %v480
    %v482 = vpop.xlane.xlu0 %481
    %vm483 = vcmp.eq.f32.partialorder %v480, %v482
    %v484 = vsel %vm483, %v479, inf
    %485 = vmin.xlane.f32.xlu0 %v484
    %v486 = vpop.xlane.xlu0 %485
    %v487 = vcvt.f32.s32 %v486
    %v488 = vcvt.f32.s32 %v482
    %v489 = vshll.u32 %v488, 16
    %v490 = vadd.s32 %v489, %v487
    %v491 = vand.u32 %v397, 65535
    %v492 = vshra.s32 %v397, 16
    %v493 = vcvt.s32.f32 %v491
    %v494 = vcvt.s32.f32 %v492
    %495 = vmin.xlane.f32.xlu0 %v494
    %v496 = vpop.xlane.xlu0 %495
    %vm497 = vcmp.eq.f32.partialorder %v494, %v496
    %v498 = vsel %vm497, %v493, inf
    %499 = vmin.xlane.f32.xlu0 %v498
    %v500 = vpop.xlane.xlu0 %499
    %v501 = vcvt.f32.s32 %v500
    %v502 = vcvt.f32.s32 %v496
    %v503 = vshll.u32 %v502, 16
    %v504 = vadd.s32 %v503, %v501
    %v505 = vand.u32 %v398, 65535
    %v506 = vshra.s32 %v398, 16
    %v507 = vcvt.s32.f32 %v505
    %v508 = vcvt.s32.f32 %v506
    %509 = vmin.xlane.f32.xlu0 %v508
    %v510 = vpop.xlane.xlu0 %509
    %vm511 = vcmp.eq.f32.partialorder %v508, %v510
    %v512 = vsel %vm511, %v507, inf
    %513 = vmin.xlane.f32.xlu0 %v512
    %v514 = vpop.xlane.xlu0 %513
    %v515 = vcvt.f32.s32 %v514
    %v516 = vcvt.f32.s32 %v510
    %v517 = vshll.u32 %v516, 16
    %v518 = vadd.s32 %v517, %v515
    %v519 = vand.u32 %v399, 65535
    %v520 = vshra.s32 %v399, 16
    %v521 = vcvt.s32.f32 %v519
    %v522 = vcvt.s32.f32 %v520
    %523 = vmin.xlane.f32.xlu0 %v522
    %v524 = vpop.xlane.xlu0 %523
    %vm525 = vcmp.eq.f32.partialorder %v522, %v524
    %v526 = vsel %vm525, %v521, inf
    %527 = vmin.xlane.f32.xlu0 %v526
    %v528 = vpop.xlane.xlu0 %527
    %v529 = vcvt.f32.s32 %v528
    %v530 = vcvt.f32.s32 %v524
    %v531 = vshll.u32 %v530, 16
    %v532 = vadd.s32 %v531, %v529
    %v533 = vand.u32 %v400, 65535
    %v534 = vshra.s32 %v400, 16
    %v535 = vcvt.s32.f32 %v533
    %v536 = vcvt.s32.f32 %v534
    %537 = vmin.xlane.f32.xlu0 %v536
    %v538 = vpop.xlane.xlu0 %537
    %vm539 = vcmp.eq.f32.partialorder %v536, %v538
    %v540 = vsel %vm539, %v535, inf
    %541 = vmin.xlane.f32.xlu0 %v540
    %v542 = vpop.xlane.xlu0 %541
    %v543 = vcvt.f32.s32 %v542
    %v544 = vcvt.f32.s32 %v538
    %v545 = vshll.u32 %v544, 16
    %v546 = vadd.s32 %v545, %v543
    %v547 = vand.u32 %v401, 65535
    %v548 = vshra.s32 %v401, 16
    %v549 = vcvt.s32.f32 %v547
    %v550 = vcvt.s32.f32 %v548
    %551 = vmin.xlane.f32.xlu0 %v550
    %v552 = vpop.xlane.xlu0 %551
    %vm553 = vcmp.eq.f32.partialorder %v550, %v552
    %v554 = vsel %vm553, %v549, inf
    %555 = vmin.xlane.f32.xlu0 %v554
    %v556 = vpop.xlane.xlu0 %555
    %v557 = vcvt.f32.s32 %v556
    %v558 = vcvt.f32.s32 %v552
    %v559 = vshll.u32 %v558, 16
    %v560 = vadd.s32 %v559, %v557
    %v561 = vand.u32 %v402, 65535
    %v562 = vshra.s32 %v402, 16
    %v563 = vcvt.s32.f32 %v561
    %v564 = vcvt.s32.f32 %v562
    %565 = vmin.xlane.f32.xlu0 %v564
    %v566 = vpop.xlane.xlu0 %565
    %vm567 = vcmp.eq.f32.partialorder %v564, %v566
    %v568 = vsel %vm567, %v563, inf
    %569 = vmin.xlane.f32.xlu0 %v568
    %v570 = vpop.xlane.xlu0 %569
    %v571 = vcvt.f32.s32 %v570
    %v572 = vcvt.f32.s32 %v566
    %v573 = vshll.u32 %v572, 16
    %v574 = vadd.s32 %v573, %v571
    %v575 = vand.u32 %v403, 65535
    %v576 = vshra.s32 %v403, 16
    %v577 = vcvt.s32.f32 %v575
    %v578 = vcvt.s32.f32 %v576
    %579 = vmin.xlane.f32.xlu0 %v578
    %v580 = vpop.xlane.xlu0 %579
    %vm581 = vcmp.eq.f32.partialorder %v578, %v580
    %v582 = vsel %vm581, %v577, inf
    %583 = vmin.xlane.f32.xlu0 %v582
    %v584 = vpop.xlane.xlu0 %583
    %v585 = vcvt.f32.s32 %v584
    %v586 = vcvt.f32.s32 %v580
    %v587 = vshll.u32 %v586, 16
    %v588 = vadd.s32 %v587, %v585
    %v589 = vand.u32 %v404, 65535
    %v590 = vshra.s32 %v404, 16
    %v591 = vcvt.s32.f32 %v589
    %v592 = vcvt.s32.f32 %v590
    %593 = vmin.xlane.f32.xlu0 %v592
    %v594 = vpop.xlane.xlu0 %593
    %vm595 = vcmp.eq.f32.partialorder %v592, %v594
    %v596 = vsel %vm595, %v591, inf
    %597 = vmin.xlane.f32.xlu0 %v596
    %v598 = vpop.xlane.xlu0 %597
    %v599 = vcvt.f32.s32 %v598
    %v600 = vcvt.f32.s32 %v594
    %v601 = vshll.u32 %v600, 16
    %v602 = vadd.s32 %v601, %v599
    %v603 = vand.u32 %v405, 65535
    %v604 = vshra.s32 %v405, 16
    %v605 = vcvt.s32.f32 %v603
    %v606 = vcvt.s32.f32 %v604
    %607 = vmin.xlane.f32.xlu0 %v606
    %v608 = vpop.xlane.xlu0 %607
    %vm609 = vcmp.eq.f32.partialorder %v606, %v608
    %v610 = vsel %vm609, %v605, inf
    %611 = vmin.xlane.f32.xlu0 %v610
    %v612 = vpop.xlane.xlu0 %611
    %v613 = vcvt.f32.s32 %v612
    %v614 = vcvt.f32.s32 %v608
    %v615 = vshll.u32 %v614, 16
    %v616 = vadd.s32 %v615, %v613
    %v617 = vand.u32 %v406, 65535
    %v618 = vshra.s32 %v406, 16
    %v619 = vcvt.s32.f32 %v617
    %v620 = vcvt.s32.f32 %v618
    %621 = vmin.xlane.f32.xlu0 %v620
    %v622 = vpop.xlane.xlu0 %621
    %vm623 = vcmp.eq.f32.partialorder %v620, %v622
    %v624 = vsel %vm623, %v619, inf
    %625 = vmin.xlane.f32.xlu0 %v624
    %v626 = vpop.xlane.xlu0 %625
    %v627 = vcvt.f32.s32 %v626
    %v628 = vcvt.f32.s32 %v622
    %v629 = vshll.u32 %v628, 16
    %v630 = vadd.s32 %v629, %v627
    %vm631 = vcmask 7168
    %632 = vst.msk [vmem:[%s3] sm:$0xff] %vm631, %v420
    %633 = vst.msk [vmem:[%s3 + $0x8] sm:$0xff] %vm631, %v434
    %634 = vst.msk [vmem:[%s3 + $0x10] sm:$0xff] %vm631, %v448
    %635 = vst.msk [vmem:[%s3 + $0x18] sm:$0xff] %vm631, %v462
    %636 = vst.msk [vmem:[%s3 + $0x20] sm:$0xff] %vm631, %v476
    %637 = vst.msk [vmem:[%s3 + $0x28] sm:$0xff] %vm631, %v490
    %638 = vst.msk [vmem:[%s3 + $0x30] sm:$0xff] %vm631, %v504
    %639 = vst.msk [vmem:[%s3 + $0x38] sm:$0xff] %vm631, %v518
    %640 = vst.msk [vmem:[%s3 + $0x40] sm:$0xff] %vm631, %v532
    %641 = vst.msk [vmem:[%s3 + $0x48] sm:$0xff] %vm631, %v546
    %642 = vst.msk [vmem:[%s3 + $0x50] sm:$0xff] %vm631, %v560
    %643 = vst.msk [vmem:[%s3 + $0x58] sm:$0xff] %vm631, %v574
    %644 = vst.msk [vmem:[%s3 + $0x60] sm:$0xff] %vm631, %v588
    %645 = vst.msk [vmem:[%s3 + $0x68] sm:$0xff] %vm631, %v602
    %646 = vst.msk [vmem:[%s3 + $0x70] sm:$0xff] %vm631, %v616
    %647 = vst.msk [vmem:[%s3 + $0x78] sm:$0xff] %vm631, %v630
    // Predicated region
    $region22: #{tpu_custom_call.1} parent=1 // pred_check
      _
    $region23: #{tpu_custom_call.1} parent=1 // pred_check_branch
      %649 = sbr.rel (0) target = $region25
    $region24: #{tpu_custom_call.1} parent=1 // pred_region
      _
    $region25: #{tpu_custom_call.1} parent=1 // pred_fallthru
      _
    // Predicated region
    $region26: #{tpu_custom_call.1} parent=1 // pred_check
      _
    $region27: #{tpu_custom_call.1} parent=1 // pred_check_branch
      %651 = sbr.rel (0) target = $region29
    $region28: #{tpu_custom_call.1} parent=1 // pred_region
      %s653 = ssub.s32 2048, 2048
      %654 = vsyncadd [#allocation4], %s653
      %s655 = sshll.u32 [#allocation7], 4
      %s656 = int_to_ptr.vmem [resolvable:$true] %s655
      %661 = dma.vmem_to_hbm [thread:$0]  %s656, 2048, %s4, [#allocation4], 128, 128, 8
    $region29: #{tpu_custom_call.1} parent=1 // pred_fallthru
      _
    // Predicated region
    $region30: #{tpu_custom_call.1} parent=1 // pred_check
      _
    $region31: #{tpu_custom_call.1} parent=1 // pred_check_branch
      %663 = sbr.rel (0) target = $region33
    $region32: #{tpu_custom_call.1} parent=1 // pred_region
      _
    $region33: #{tpu_custom_call.1} parent=1 // pred_fallthru
      _
    // Predicated region
    $region34: #{tpu_custom_call.1} parent=1 // pred_check
      _
    $region35: #{tpu_custom_call.1} parent=1 // pred_check_branch
      %665 = sbr.rel (0) target = $region37
    $region36: #{tpu_custom_call.1} parent=1 // pred_region
      %666 = dma.done [#allocation4], 2048
    $region37: #{tpu_custom_call.1} parent=1 // pred_fallthru
      _
    %667 = vsyncpa [#allocation3], 1
    %668 = vsyncpa [#allocation6], 1
    %669 = vsyncpa [#allocation4], 1

</llo_original>
